<compile_context>
chip_gen: v7x
topology: tpu7x:2x2x1
jax: 0.10.0
libtpu: 0.0.40
codegen_flags: <defaults>
</compile_context>

<pallas_src>
import functools

import jax
import jax.numpy as jnp
from jax.experimental import pallas as pl
from jax.experimental.pallas import tpu as pltpu


_LANE = 128
_MAX_SINGLE_BLOCK = 1024   # below this, one (Np, Np) block of A (grid 1x1)
_TILE = 512                # row/col tile for larger graphs


def _round_up(x, m):
    return (x + m - 1) // m * m


def _fused_gcn_kernel(a_rows_ref, x_ref, w1_ref, b1_ref, w2_ref, b2_ref,
                      a_tile_ref, o_ref, hw2_ref, acc_ref, *, bk,
                      compute_dtype):
    """Fused 2-layer GCN.

    Grid = (output row-tiles i, layer-2 reduction tiles j over A's columns).

    Phase A (only while i == 0): for reduction tile j compute
        hw2[j-rows] = relu(A[j-rows, :] @ X @ W1 + b1) @ W2
    and keep it resident in the VMEM scratch for the rest of the grid.

    Phase B (every step): accumulate the layer-2 reduction
        out[i-rows] += A[i-rows, j-cols] @ hw2[j-rows]
    adding the bias and storing on the last j step.
    """
    i = pl.program_id(0)
    j = pl.program_id(1)
    off = pl.multiple_of(j * bk, bk)

    # ---- phase A: build hw2 row-block j (runs once, during the first i) ----
    @pl.when(i == 0)
    def _():
        a_rows = a_rows_ref[...].astype(compute_dtype)
        x = x_ref[...].astype(compute_dtype)
        ax = jnp.dot(a_rows, x, preferred_element_type=jnp.float32)
        h = jnp.dot(ax.astype(compute_dtype),
                    w1_ref[...].astype(compute_dtype),
                    preferred_element_type=jnp.float32)
        h = jnp.maximum(h + b1_ref[...], 0.0)
        hw2 = jnp.dot(h.astype(compute_dtype),
                      w2_ref[...].astype(compute_dtype),
                      preferred_element_type=jnp.float32)
        hw2_ref[pl.ds(off, bk), :] = hw2

    # ---- phase B: layer-2 row-block reduction over j ------------------------
    @pl.when(j == 0)
    def _():
        acc_ref[...] = jnp.zeros_like(acc_ref)

    acc_ref[...] += jnp.dot(
        a_tile_ref[...].astype(compute_dtype),
        hw2_ref[pl.ds(off, bk), :].astype(compute_dtype),
        preferred_element_type=jnp.float32)

    @pl.when(j == pl.num_programs(1) - 1)
    def _():
        o_ref[...] = (acc_ref[...] + b2_ref[...]).astype(o_ref.dtype)


def gcn_forward(A, X, params, *, compute_dtype=jnp.float32,
                vmem_limit_bytes=None):
    """Fused GCN forward: gcn2(A, relu(gcn1(A, X))) in one pallas_call."""
    N = A.shape[0]
    c_in = X.shape[1]
    w1_t, b1 = params["w1_t"], params["b1"]
    w2_t, b2 = params["w2_t"], params["b2"]
    c_hid = w1_t.shape[1]
    c_out = w2_t.shape[1]
    assert A.shape == (N, N) and X.shape == (N, c_in)
    assert w1_t.shape == (c_in, c_hid) and b1.shape == (1, c_hid)
    assert w2_t.shape == (c_hid, c_out) and b2.shape == (1, c_out)

    # ---- pad to TPU-friendly shapes ----------------------------------------
    # Rows (sublane axis) -> multiple of 8; feature dims (lane axis) -> 128.
    if N <= _MAX_SINGLE_BLOCK:
        n_p = _round_up(N, 8)
        bm = bk = n_p
    else:
        # TODO(synk): for very large N the (bk, n_p) row-slab of A used by the
        # layer-1 phase stops fitting VMEM; that regime needs an extra
        # column-reduction grid axis for layer 1 as well.
        n_p = _round_up(N, _TILE)
        bm = bk = _TILE
    ci = _round_up(c_in, _LANE)
    ch = _round_up(c_hid, _LANE)
    co = _round_up(c_out, _LANE)

    f32 = jnp.float32
    a_p = jnp.zeros((n_p, n_p), f32).at[:N, :N].set(A.astype(f32))
    x_p = jnp.zeros((n_p, ci), f32).at[:N, :c_in].set(X.astype(f32))
    w1_p = jnp.zeros((ci, ch), f32).at[:c_in, :c_hid].set(w1_t.astype(f32))
    b1_p = jnp.zeros((1, ch), f32).at[:, :c_hid].set(b1.astype(f32))
    w2_p = jnp.zeros((ch, co), f32).at[:c_hid, :c_out].set(w2_t.astype(f32))
    b2_p = jnp.zeros((1, co), f32).at[:, :c_out].set(b2.astype(f32))

    grid = (n_p // bm, n_p // bk)
    kernel = functools.partial(_fused_gcn_kernel, bk=bk,
                               compute_dtype=compute_dtype)

    # Rough double-buffered working-set estimate; raise scoped VMEM only when
    # the per-generation defaults would be too small (never at the test size).
    est = (2 * bk * n_p * 4            # A row-slab (layer 1)
           + 2 * bm * bk * 4           # A tile (layer 2)
           + 2 * n_p * ci * 4          # X (resident)
           + 2 * (ci * ch + ch * co + ch + co) * 4   # weights + biases
           + 2 * bm * co * 4           # output block
           + n_p * co * 4              # hw2 scratch
           + bm * co * 4)              # accumulator
    cp_kwargs = dict(dimension_semantics=("arbitrary", "arbitrary"))
    if vmem_limit_bytes is None and est > 12 * 1024 * 1024:
        vmem_limit_bytes = min(int(est * 3 // 2), 64 * 1024 * 1024)
    if vmem_limit_bytes is not None:
        cp_kwargs["vmem_limit_bytes"] = int(vmem_limit_bytes)

    out_p = pl.pallas_call(
        kernel,
        out_shape=jax.ShapeDtypeStruct((n_p, co), f32),
        grid=grid,
        in_specs=[
            pl.BlockSpec((bk, n_p), lambda i, j: (j, 0)),   # A row-slab (L1)
            pl.BlockSpec((n_p, ci), lambda i, j: (0, 0)),   # X (resident)
            pl.BlockSpec((ci, ch), lambda i, j: (0, 0)),    # W1^T
            pl.BlockSpec((1, ch), lambda i, j: (0, 0)),     # b1
            pl.BlockSpec((ch, co), lambda i, j: (0, 0)),    # W2^T
            pl.BlockSpec((1, co), lambda i, j: (0, 0)),     # b2
            pl.BlockSpec((bm, bk), lambda i, j: (i, j)),    # A tile (L2)
        ],
        out_specs=pl.BlockSpec((bm, co), lambda i, j: (i, 0)),
        scratch_shapes=[
            pltpu.VMEM((n_p, co), jnp.float32),   # hw2, resident across grid
            pltpu.VMEM((bm, co), jnp.float32),    # layer-2 accumulator
        ],
        compiler_params=pltpu.CompilerParams(**cp_kwargs),
    )(a_p, x_p, w1_p, b1_p, w2_p, b2_p, a_p)

    return out_p[:N, :c_out]


def init_params(key, in_channels, hidden_channels, out_channels):
    """Deterministic synthetic parameters (nn.Linear-like shapes)."""
    k1, k2, k3, k4 = jax.random.split(key, 4)
    s1 = 1.0 / jnp.sqrt(in_channels)
    s2 = 1.0 / jnp.sqrt(hidden_channels)
    # torch Linear weight is [out, in]; we store the transpose [in, out].
    w1 = jax.random.uniform(k1, (hidden_channels, in_channels),
                            jnp.float32, -s1, s1)
    b1 = jax.random.uniform(k2, (hidden_channels,), jnp.float32, -s1, s1)
    w2 = jax.random.uniform(k3, (out_channels, hidden_channels),
                            jnp.float32, -s2, s2)
    b2 = jax.random.uniform(k4, (out_channels,), jnp.float32, -s2, s2)
    return {
        "w1_t": w1.T,                 # [in, hidden]
        "b1": b1.reshape(1, -1),      # [1, hidden]
        "w2_t": w2.T,                 # [hidden, out]
        "b2": b2.reshape(1, -1),      # [1, out]
    }


def gcn_reference(A, X, params):
    """Pure-JAX reference mirroring the PyTorch forward (full f32 precision)."""
    hi = jax.lax.Precision.HIGHEST
    h = jnp.maximum(
        jnp.dot(jnp.dot(A, X, precision=hi), params["w1_t"], precision=hi)
        + params["b1"], 0.0)
    return (jnp.dot(jnp.dot(A, h, precision=hi), params["w2_t"], precision=hi)
            + params["b2"])


if __name__ == "__main__":
    # Small shapes: N=16 nodes, in=8, hidden=32, out=16 features.
    N, C_IN, C_HID, C_OUT = 16, 8, 32, 16

    key = jax.random.PRNGKey(0)
    ka, kx, kp = jax.random.split(key, 3)

    A = jax.random.uniform(ka, (N, N), jnp.float32)      # dense adjacency
    X = jax.random.normal(kx, (N, C_IN), jnp.float32)    # node features
    params = init_params(kp, C_IN, C_HID, C_OUT)

    ref = gcn_reference(A, X, params)

    # float32 MXU-operand path (exact semantics; layer-2 re-associated).
    out = jax.block_until_ready(gcn_forward(A, X, params))
    assert out.shape == (N, C_OUT)
    assert jnp.allclose(out, ref, atol=1e-3, rtol=1e-3), \
        float(jnp.max(jnp.abs(out - ref)))

    # bf16 MXU-operand path (v6e/v7x oriented), f32 accumulation.
    out_bf16 = jax.block_until_ready(
        gcn_forward(A, X, params, compute_dtype=jnp.bfloat16))
    assert out_bf16.shape == (N, C_OUT)
    rel = jnp.linalg.norm(out_bf16 - ref) / (jnp.linalg.norm(ref) + 1e-6)
    assert rel < 5e-2, float(rel)

    print("KERNEL_OK")
</pallas_src>

<mosaic_0001>
module attributes {stable_mosaic.version = 11 : i64} {
  func.func @_fused_gcn_kernel(%arg0: i32, %arg1: i32, %arg2: memref<16x16xf32, #tpu.memory_space<vmem>>, %arg3: memref<16x128xf32, #tpu.memory_space<vmem>>, %arg4: memref<128x128xf32, #tpu.memory_space<vmem>>, %arg5: memref<1x128xf32, #tpu.memory_space<vmem>>, %arg6: memref<128x128xf32, #tpu.memory_space<vmem>>, %arg7: memref<1x128xf32, #tpu.memory_space<vmem>>, %arg8: memref<16x16xf32, #tpu.memory_space<vmem>>, %arg9: memref<16x128xf32, #tpu.memory_space<vmem>>, %arg10: memref<16x128xf32, #tpu.memory_space<vmem>>, %arg11: memref<16x128xf32, #tpu.memory_space<vmem>>) attributes {dimension_semantics = [#tpu.dimension_semantics<arbitrary>, #tpu.dimension_semantics<arbitrary>], iteration_bounds = array<i64: 1, 1>, scalar_prefetch = 0 : i64, scratch_operands = 2 : i64, tpu.core_type = #tpu.core_type<tc>, window_params = [{transform_indices = @transform_0, window_bounds = array<i64: 16, 16>}, {pipeline_mode = #tpu.pipeline_mode<synchronous>, transform_indices = @transform_1, window_bounds = array<i64: 16, 128>}, {pipeline_mode = #tpu.pipeline_mode<synchronous>, transform_indices = @transform_2, window_bounds = array<i64: 128, 128>}, {pipeline_mode = #tpu.pipeline_mode<synchronous>, transform_indices = @transform_3, window_bounds = array<i64: 1, 128>}, {pipeline_mode = #tpu.pipeline_mode<synchronous>, transform_indices = @transform_4, window_bounds = array<i64: 128, 128>}, {pipeline_mode = #tpu.pipeline_mode<synchronous>, transform_indices = @transform_5, window_bounds = array<i64: 1, 128>}, {transform_indices = @transform_6, window_bounds = array<i64: 16, 16>}, {transform_indices = @transform_7, window_bounds = array<i64: 16, 128>}]} {
    %c16_i32 = arith.constant 16 : i32
    %0 = arith.muli %arg1, %c16_i32 : i32
    %1 = tpu.assume_multiple %0, 16 : i32
    %c0_i32 = arith.constant 0 : i32
    %2 = arith.cmpi eq, %arg0, %c0_i32 : i32
    %3 = arith.extui %2 : i1 to i32
    %c0_i32_0 = arith.constant 0 : i32
    %4 = arith.cmpi ne, %3, %c0_i32_0 : i32
    scf.if %4 {
      %c0_11 = arith.constant 0 : index
      %c0_12 = arith.constant 0 : index
      %18 = vector.load %arg2[%c0_11, %c0_12] : memref<16x16xf32, #tpu.memory_space<vmem>>, vector<16x16xf32>
      %c0_13 = arith.constant 0 : index
      %c0_14 = arith.constant 0 : index
      %19 = vector.load %arg3[%c0_13, %c0_14] : memref<16x128xf32, #tpu.memory_space<vmem>>, vector<16x128xf32>
      %cst_15 = arith.constant dense<0.000000e+00> : vector<16x128xf32>
      %20 = tpu.matmul %18, %19, %cst_15 {dimension_numbers = #tpu.dot_dimension_numbers<[1], [0], [0], [1], [0, 0, 1, 1], [], []>} : vector<16x16xf32>, vector<16x128xf32>, vector<16x128xf32> -> vector<16x128xf32>
      %c0_16 = arith.constant 0 : index
      %c0_17 = arith.constant 0 : index
      %21 = vector.load %arg4[%c0_16, %c0_17] : memref<128x128xf32, #tpu.memory_space<vmem>>, vector<128x128xf32>
      %cst_18 = arith.constant dense<0.000000e+00> : vector<16x128xf32>
      %22 = tpu.matmul %20, %21, %cst_18 {dimension_numbers = #tpu.dot_dimension_numbers<[1], [0], [0], [1], [0, 0, 1, 1], [], []>} : vector<16x128xf32>, vector<128x128xf32>, vector<16x128xf32> -> vector<16x128xf32>
      %c0_19 = arith.constant 0 : index
      %c0_20 = arith.constant 0 : index
      %23 = vector.load %arg5[%c0_19, %c0_20] : memref<1x128xf32, #tpu.memory_space<vmem>>, vector<1x128xf32>
      %24 = vector.broadcast %23 : vector<1x128xf32> to vector<16x128xf32>
      %25 = arith.addf %22, %24 : vector<16x128xf32>
      %cst_21 = arith.constant 0.000000e+00 : f32
      %26 = vector.broadcast %cst_21 : f32 to vector<16x128xf32>
      %27 = arith.maximumf %25, %26 : vector<16x128xf32>
      %c0_22 = arith.constant 0 : index
      %c0_23 = arith.constant 0 : index
      %28 = vector.load %arg6[%c0_22, %c0_23] : memref<128x128xf32, #tpu.memory_space<vmem>>, vector<128x128xf32>
      %cst_24 = arith.constant dense<0.000000e+00> : vector<16x128xf32>
      %29 = tpu.matmul %27, %28, %cst_24 {dimension_numbers = #tpu.dot_dimension_numbers<[1], [0], [0], [1], [0, 0, 1, 1], [], []>} : vector<16x128xf32>, vector<128x128xf32>, vector<16x128xf32> -> vector<16x128xf32>
      %30 = arith.index_cast %1 : i32 to index
      %c0_25 = arith.constant 0 : index
      %31 = vector.load %arg10[%30, %c0_25] : memref<16x128xf32, #tpu.memory_space<vmem>>, vector<16x128xf32>
      tpu.vector_store %arg10[%30, %c0_25], %29 {strides = array<i32>} : memref<16x128xf32, #tpu.memory_space<vmem>>, vector<16x128xf32>,
    } else {
    }
    %c0_i32_1 = arith.constant 0 : i32
    %5 = arith.cmpi eq, %arg1, %c0_i32_1 : i32
    %6 = arith.extui %5 : i1 to i32
    %c0_i32_2 = arith.constant 0 : i32
    %7 = arith.cmpi ne, %6, %c0_i32_2 : i32
    scf.if %7 {
      %cst_11 = arith.constant 0.000000e+00 : f32
      %18 = vector.broadcast %cst_11 : f32 to vector<16x128xf32>
      %c0_12 = arith.constant 0 : index
      %c0_13 = arith.constant 0 : index
      %19 = vector.load %arg11[%c0_12, %c0_13] : memref<16x128xf32, #tpu.memory_space<vmem>>, vector<16x128xf32>
      tpu.vector_store %arg11[%c0_12, %c0_13], %18 {strides = array<i32>} : memref<16x128xf32, #tpu.memory_space<vmem>>, vector<16x128xf32>,
    } else {
    }
    %c0 = arith.constant 0 : index
    %c0_3 = arith.constant 0 : index
    %8 = vector.load %arg11[%c0, %c0_3] : memref<16x128xf32, #tpu.memory_space<vmem>>, vector<16x128xf32>
    %c0_4 = arith.constant 0 : index
    %c0_5 = arith.constant 0 : index
    %9 = vector.load %arg8[%c0_4, %c0_5] : memref<16x16xf32, #tpu.memory_space<vmem>>, vector<16x16xf32>
    %10 = arith.index_cast %1 : i32 to index
    %c0_6 = arith.constant 0 : index
    %11 = vector.load %arg10[%10, %c0_6] : memref<16x128xf32, #tpu.memory_space<vmem>>, vector<16x128xf32>
    %cst = arith.constant dense<0.000000e+00> : vector<16x128xf32>
    %12 = tpu.matmul %9, %11, %cst {dimension_numbers = #tpu.dot_dimension_numbers<[1], [0], [0], [1], [0, 0, 1, 1], [], []>} : vector<16x16xf32>, vector<16x128xf32>, vector<16x128xf32> -> vector<16x128xf32>
    %13 = arith.addf %8, %12 : vector<16x128xf32>
    %c0_7 = arith.constant 0 : index
    %c0_8 = arith.constant 0 : index
    %14 = vector.load %arg11[%c0_7, %c0_8] : memref<16x128xf32, #tpu.memory_space<vmem>>, vector<16x128xf32>
    tpu.vector_store %arg11[%c0_7, %c0_8], %13 {strides = array<i32>} : memref<16x128xf32, #tpu.memory_space<vmem>>, vector<16x128xf32>,
    %c0_i32_9 = arith.constant 0 : i32
    %15 = arith.cmpi eq, %arg1, %c0_i32_9 : i32
    %16 = arith.extui %15 : i1 to i32
    %c0_i32_10 = arith.constant 0 : i32
    %17 = arith.cmpi ne, %16, %c0_i32_10 : i32
    scf.if %17 {
      %c0_11 = arith.constant 0 : index
      %c0_12 = arith.constant 0 : index
      %18 = vector.load %arg11[%c0_11, %c0_12] : memref<16x128xf32, #tpu.memory_space<vmem>>, vector<16x128xf32>
      %c0_13 = arith.constant 0 : index
      %c0_14 = arith.constant 0 : index
      %19 = vector.load %arg7[%c0_13, %c0_14] : memref<1x128xf32, #tpu.memory_space<vmem>>, vector<1x128xf32>
      %20 = vector.broadcast %19 : vector<1x128xf32> to vector<16x128xf32>
      %21 = arith.addf %18, %20 : vector<16x128xf32>
      %c0_15 = arith.constant 0 : index
      %c0_16 = arith.constant 0 : index
      %22 = vector.load %arg9[%c0_15, %c0_16] : memref<16x128xf32, #tpu.memory_space<vmem>>, vector<16x128xf32>
      tpu.vector_store %arg9[%c0_15, %c0_16], %21 {strides = array<i32>} : memref<16x128xf32, #tpu.memory_space<vmem>>, vector<16x128xf32>,
    } else {
    }
    return
  }
  func.func @transform_0(%arg0: i32, %arg1: i32) -> (i32, i32) {
    %c0_i32 = arith.constant 0 : i32
    %c0_i32_0 = arith.constant 0 : i32
    return %arg1, %c0_i32 : i32, i32
  }
  func.func @transform_1(%arg0: i32, %arg1: i32) -> (i32, i32) {
    %c0_i32 = arith.constant 0 : i32
    %c0_i32_0 = arith.constant 0 : i32
    %c0_i32_1 = arith.constant 0 : i32
    return %c0_i32, %c0_i32_0 : i32, i32
  }
  func.func @transform_2(%arg0: i32, %arg1: i32) -> (i32, i32) {
    %c0_i32 = arith.constant 0 : i32
    %c0_i32_0 = arith.constant 0 : i32
    %c0_i32_1 = arith.constant 0 : i32
    return %c0_i32, %c0_i32_0 : i32, i32
  }
  func.func @transform_3(%arg0: i32, %arg1: i32) -> (i32, i32) {
    %c0_i32 = arith.constant 0 : i32
    %c0_i32_0 = arith.constant 0 : i32
    %c0_i32_1 = arith.constant 0 : i32
    return %c0_i32, %c0_i32_0 : i32, i32
  }
  func.func @transform_4(%arg0: i32, %arg1: i32) -> (i32, i32) {
    %c0_i32 = arith.constant 0 : i32
    %c0_i32_0 = arith.constant 0 : i32
    %c0_i32_1 = arith.constant 0 : i32
    return %c0_i32, %c0_i32_0 : i32, i32
  }
  func.func @transform_5(%arg0: i32, %arg1: i32) -> (i32, i32) {
    %c0_i32 = arith.constant 0 : i32
    %c0_i32_0 = arith.constant 0 : i32
    %c0_i32_1 = arith.constant 0 : i32
    return %c0_i32, %c0_i32_0 : i32, i32
  }
  func.func @transform_6(%arg0: i32, %arg1: i32) -> (i32, i32) {
    %c0_i32 = arith.constant 0 : i32
    return %arg0, %arg1 : i32, i32
  }
  func.func @transform_7(%arg0: i32, %arg1: i32) -> (i32, i32) {
    %c0_i32 = arith.constant 0 : i32
    %c0_i32_0 = arith.constant 0 : i32
    return %arg0, %c0_i32 : i32, i32
  }
}

</mosaic_0001>

<llo_original>
// kernel: tpu_custom_call.1
$region0: #{tpu_custom_call.1}
  #allocation0 [shape = 'u32[]', space=smem, size = 0x4, offset = 0x4, fixed_abs, tag = 'smem constant byte address 0x4 - core index']
  #allocation1 [shape = 'u32[144,128]{1,0:T(1,128)}', space=vmem, size = 0x12000, scoped, tag = 'internal scratch']
  #allocation2 [shape = 'f32[16,128]{1,0:T(8,128)}', space=vmem, size = 0x2000, scoped, tag = 'scratch operand']
  #allocation3 [shape = 'f32[16,128]{1,0:T(8,128)}', space=vmem, size = 0x2000, scoped, tag = 'scratch operand']
  %s0 = inlined_call_operand.hbm [shape: f32[16,16], index: 0, kind: input, shape index: {}]
  %s1 = inlined_call_operand.hbm [shape: f32[16,128], index: 1, kind: input, shape index: {}]
  %s2 = inlined_call_operand.hbm [shape: f32[128,128], index: 2, kind: input, shape index: {}]
  %s3 = inlined_call_operand.vmem [shape: f32[1,128], index: 3, kind: input, shape index: {}]
  %s4 = inlined_call_operand.hbm [shape: f32[128,128], index: 4, kind: input, shape index: {}]
  %s5 = inlined_call_operand.vmem [shape: f32[1,128], index: 5, kind: input, shape index: {}]
  %s6 = inlined_call_operand.vmem [shape: f32[16,16], index: 6, kind: input, shape index: {}]
  %s7 = inlined_call_operand.hbm [shape: f32[16,128], index: 7, kind: output, shape index: {}]
  %s8 = sld [smem:[#allocation0]]
  $region66: #{tpu_custom_call.1} parent=0
    _
  %s10 = ssub.s32 1, %s8
  %s11 = scalar_select 0, %s10, %s8
  $region1: #{tpu_custom_call.1} parent=0
    #allocation4 [shape = 'u8[8192]{0}', space=vmem, size = 0x2000, scoped, tag = 'input window, operand 0, single buffered']
    #allocation5 [shape = 's32[1]{0}', space=sflag, size = 0x4, scoped, tag = 'scoped memory for tpu_custom_call.1']
    #allocation6 [shape = 's32[1]{0}', space=sflag, size = 0x4, scoped, tag = 'scoped memory for tpu_custom_call.1']
    #allocation7 [shape = 'u8[8192]{0}', space=vmem, size = 0x2000, scoped, tag = 'input window, operand 1, single buffered']
    #allocation8 [shape = 's32[1]{0}', space=sflag, size = 0x4, scoped, tag = 'scoped memory for tpu_custom_call.1']
    #allocation9 [shape = 'u8[65536]{0}', space=vmem, size = 0x10000, scoped, tag = 'input window, operand 2, single buffered']
    #allocation10 [shape = 'u8[65536]{0}', space=vmem, size = 0x10000, scoped, tag = 'input window, operand 4, single buffered']
    #allocation11 [shape = 's32[1]{0}', space=sflag, size = 0x4, scoped, tag = 'scoped memory for tpu_custom_call.1']
    #allocation12 [shape = 'u8[8192]{0}', space=vmem, size = 0x2000, scoped, tag = 'output window, operand 0, single buffered']
    %12 = vsyncpa [#allocation5], 0
    %13 = vsyncpa [#allocation8], 0
    %14 = vsyncpa [#allocation11], 0
    %15 = vsyncpa [#allocation6], 0
    // Predicated region
    $region2: #{tpu_custom_call.1} parent=1 // pred_check
      _
    $region3: #{tpu_custom_call.1} parent=1 // pred_check_branch
      %17 = sbr.rel (0) target = $region5
    $region4: #{tpu_custom_call.1} parent=1 // pred_region
      %s19 = ssub.s32 256, 256
      %20 = vsyncadd [#allocation5], %s19
      %s21 = sshll.u32 [#allocation4], 4
      %s22 = int_to_ptr.vmem [resolvable:$true] %s21
      %27 = dma.hbm_to_vmem [thread:$0]  %s0, 256, %s22, [#allocation5], 128, 128, 8
    $region5: #{tpu_custom_call.1} parent=1 // pred_fallthru
      _
    // Predicated region
    $region6: #{tpu_custom_call.1} parent=1 // pred_check
      _
    $region7: #{tpu_custom_call.1} parent=1 // pred_check_branch
      %29 = sbr.rel (0) target = $region9
    $region8: #{tpu_custom_call.1} parent=1 // pred_region
      %s31 = ssub.s32 256, 256
      %32 = vsyncadd [#allocation8], %s31
      %s33 = sshll.u32 [#allocation7], 4
      %s34 = int_to_ptr.vmem [resolvable:$true] %s33
      %39 = dma.hbm_to_vmem [thread:$0]  %s1, 256, %s34, [#allocation8], 128, 128, 8
    $region9: #{tpu_custom_call.1} parent=1 // pred_fallthru
      _
    // Predicated region
    $region10: #{tpu_custom_call.1} parent=1 // pred_check
      _
    $region11: #{tpu_custom_call.1} parent=1 // pred_check_branch
      %41 = sbr.rel (0) target = $region13
    $region12: #{tpu_custom_call.1} parent=1 // pred_region
      %s43 = ssub.s32 2048, 2048
      %44 = vsyncadd [#allocation8], %s43
      %s45 = sshll.u32 [#allocation9], 4
      %s46 = int_to_ptr.vmem [resolvable:$true] %s45
      %51 = dma.hbm_to_vmem [thread:$0]  %s2, 2048, %s46, [#allocation8], 128, 128, 8
    $region13: #{tpu_custom_call.1} parent=1 // pred_fallthru
      _
    // Predicated region
    $region14: #{tpu_custom_call.1} parent=1 // pred_check
      _
    $region15: #{tpu_custom_call.1} parent=1 // pred_check_branch
      %53 = sbr.rel (0) target = $region17
    $region16: #{tpu_custom_call.1} parent=1 // pred_region
      _
    $region17: #{tpu_custom_call.1} parent=1 // pred_fallthru
      _
    // Predicated region
    $region18: #{tpu_custom_call.1} parent=1 // pred_check
      _
    $region19: #{tpu_custom_call.1} parent=1 // pred_check_branch
      %55 = sbr.rel (0) target = $region21
    $region20: #{tpu_custom_call.1} parent=1 // pred_region
      %s57 = ssub.s32 2048, 2048
      %58 = vsyncadd [#allocation11], %s57
      %s59 = sshll.u32 [#allocation10], 4
      %s60 = int_to_ptr.vmem [resolvable:$true] %s59
      %65 = dma.hbm_to_vmem [thread:$0]  %s4, 2048, %s60, [#allocation11], 128, 128, 8
    $region21: #{tpu_custom_call.1} parent=1 // pred_fallthru
      _
    // Predicated region
    $region22: #{tpu_custom_call.1} parent=1 // pred_check
      _
    $region23: #{tpu_custom_call.1} parent=1 // pred_check_branch
      %67 = sbr.rel (0) target = $region25
    $region24: #{tpu_custom_call.1} parent=1 // pred_region
      _
    $region25: #{tpu_custom_call.1} parent=1 // pred_fallthru
      _
    // Predicated region
    $region26: #{tpu_custom_call.1} parent=1 // pred_check
      _
    $region27: #{tpu_custom_call.1} parent=1 // pred_check_branch
      %69 = sbr.rel (0) target = $region29
    $region28: #{tpu_custom_call.1} parent=1 // pred_region
      _
    $region29: #{tpu_custom_call.1} parent=1 // pred_fallthru
      _
    // Predicated region
    $region30: #{tpu_custom_call.1} parent=1 // pred_check
      _
    $region31: #{tpu_custom_call.1} parent=1 // pred_check_branch
      %71 = sbr.rel (0) target = $region33
    $region32: #{tpu_custom_call.1} parent=1 // pred_region
      %72 = dma.done [#allocation5], 256
    $region33: #{tpu_custom_call.1} parent=1 // pred_fallthru
      _
    // Predicated region
    $region34: #{tpu_custom_call.1} parent=1 // pred_check
      _
    $region35: #{tpu_custom_call.1} parent=1 // pred_check_branch
      %74 = sbr.rel (0) target = $region37
    $region36: #{tpu_custom_call.1} parent=1 // pred_region
      %75 = dma.done [#allocation8], 256
    $region37: #{tpu_custom_call.1} parent=1 // pred_fallthru
      _
    // Predicated region
    $region38: #{tpu_custom_call.1} parent=1 // pred_check
      _
    $region39: #{tpu_custom_call.1} parent=1 // pred_check_branch
      %77 = sbr.rel (0) target = $region41
    $region40: #{tpu_custom_call.1} parent=1 // pred_region
      %78 = dma.done [#allocation8], 2048
    $region41: #{tpu_custom_call.1} parent=1 // pred_fallthru
      _
    // Predicated region
    $region42: #{tpu_custom_call.1} parent=1 // pred_check
      _
    $region43: #{tpu_custom_call.1} parent=1 // pred_check_branch
      %80 = sbr.rel (0) target = $region45
    $region44: #{tpu_custom_call.1} parent=1 // pred_region
      %81 = dma.done [#allocation11], 2048
    $region45: #{tpu_custom_call.1} parent=1 // pred_fallthru
      _
    %s82 = smul.u32 0, 16
    %p83 = scmp.eq.s32.totalorder 0, 0
    // Predicated region
    $region46: #{tpu_custom_call.1} parent=1 // pred_check
      %p84 = pneg %p83
    $region47: #{tpu_custom_call.1} parent=1 // pred_check_branch
      %86 = sbr.rel (%p84) target = $region49
    $region48: #{tpu_custom_call.1} parent=1 // pred_region
      %v87 = vld [vmem:[#allocation4] sm:$0xff]
      %v88 = vld [vmem:[#allocation4 + $0x8] sm:$0xff]
      %v89 = vld [vmem:[#allocation7] sm:$0xff]
      %v90 = vld [vmem:[#allocation7 + $0x8] sm:$0xff]
      %vm91 = vcmask 130048
      %v93 = vsel %vm91, %v87, 0
      %v96 = vsel %vm91, %v88, 0
      %98 = vmatprep.subr.mxu0 0.0
      %99 = vmatpush1.msra.mxu0 %v89
      %100 = vmatprep.subr.mxu0 0.0
      %101 = vmatpush1.msra.mxu0 %v90
      %102 = vmatprep.subr.mxu0 0.0
      %103 = vmatpush1.msra.mxu0 0.0
      %104 = vmatprep.subr.mxu0 0.0
      %105 = vmatpush1.msra.mxu0 0.0
      %106 = vmatprep.subr.mxu0 0.0
      %107 = vmatpush1.msra.mxu0 0.0
      %108 = vmatprep.subr.mxu0 0.0
      %109 = vmatpush1.msra.mxu0 0.0
      %110 = vmatprep.subr.mxu0 0.0
      %111 = vmatpush1.msra.mxu0 0.0
      %112 = vmatprep.subr.mxu0 0.0
      %113 = vmatpush1.msra.mxu0 0.0
      %114 = vmatprep.subr.mxu0 0.0
      %115 = vmatpush1.msra.mxu0 0.0
      %116 = vmatprep.subr.mxu0 0.0
      %117 = vmatpush1.msra.mxu0 0.0
      %118 = vmatprep.subr.mxu0 0.0
      %119 = vmatpush1.msra.mxu0 0.0
      %120 = vmatprep.subr.mxu0 0.0
      %121 = vmatpush1.msra.mxu0 0.0
      %122 = vmatprep.subr.mxu0 0.0
      %123 = vmatpush1.msra.mxu0 0.0
      %124 = vmatprep.subr.mxu0 0.0
      %125 = vmatpush1.msra.mxu0 0.0
      %126 = vmatprep.subr.mxu0 0.0
      %127 = vmatpush1.msra.mxu0 0.0
      %128 = vmatprep.subr.mxu0 0.0
      %129 = vmatpush1.msra.mxu0 0.0
      %130 = vmatprep.subr.mxu0 0.0
      %131 = vmatpush1.msra.mxu0 0.0
      %132 = vmatprep.subr.mxu0 0.0
      %133 = vmatpush1.msra.mxu0 0.0
      %134 = vmatprep.subr.mxu0 0.0
      %135 = vmatpush1.msra.mxu0 0.0
      %136 = vmatprep.subr.mxu0 0.0
      %137 = vmatpush1.msra.mxu0 0.0
      %138 = vmatprep.subr.mxu0 0.0
      %139 = vmatpush1.msra.mxu0 0.0
      %140 = vmatprep.subr.mxu0 0.0
      %141 = vmatpush1.msra.mxu0 0.0
      %142 = vmatprep.subr.mxu0 0.0
      %143 = vmatpush1.msra.mxu0 0.0
      %144 = vmatprep.subr.mxu0 0.0
      %145 = vmatpush1.msra.mxu0 0.0
      %146 = vmatprep.subr.mxu0 0.0
      %147 = vmatpush1.msra.mxu0 0.0
      %148 = vmatprep.subr.mxu0 0.0
      %149 = vmatpush1.msra.mxu0 0.0
      %150 = vmatprep.subr.mxu0 0.0
      %151 = vmatpush1.msra.mxu0 0.0
      %152 = vmatprep.subr.mxu0 0.0
      %153 = vmatpush1.msra.mxu0 0.0
      %154 = vmatprep.subr.mxu0 0.0
      %155 = vmatpush1.msra.mxu0 0.0
      %156 = vmatprep.subr.mxu0 0.0
      %157 = vmatpush1.msra.mxu0 0.0
      %158 = vmatprep.subr.mxu0 0.0
      %159 = vmatpush1.msra.mxu0 0.0
      %160 = vmatprep.subr.mxu0 0.0
      %161 = vmatpush1.msra.mxu0 0.0
      %162 = vmatprep.mubr.f32.mxu0 0.0
      %163 = vmatmul.mubr.f32.gmra.mrb[0].mxu0 %v93
      %v164 = vpop.f32.mrb[0].mxu0
      %v165 = vadd.f32 0.0, %v164
      %v166 = vpop.f32.mrb[0].mxu0
      %167 = vmatprep.mubr.f32.mxu0 0.0
      %168 = vmatmul.mubr.f32.gmra.mrb[0].mxu0 %v96
      %v169 = vpop.f32.mrb[0].mxu0
      %v170 = vadd.f32 0.0, %v169
      %v171 = vpop.f32.mrb[0].mxu0
      %172 = vdwg.mxu0
      %v173 = vld [vmem:[#allocation9] sm:$0xff]
      %v174 = vld [vmem:[#allocation9 + $0x8] sm:$0xff]
      %v175 = vld [vmem:[#allocation9 + $0x10] sm:$0xff]
      %v176 = vld [vmem:[#allocation9 + $0x18] sm:$0xff]
      %v177 = vld [vmem:[#allocation9 + $0x20] sm:$0xff]
      %v178 = vld [vmem:[#allocation9 + $0x28] sm:$0xff]
      %v179 = vld [vmem:[#allocation9 + $0x30] sm:$0xff]
      %v180 = vld [vmem:[#allocation9 + $0x38] sm:$0xff]
      %v181 = vld [vmem:[#allocation9 + $0x40] sm:$0xff]
      %v182 = vld [vmem:[#allocation9 + $0x48] sm:$0xff]
      %v183 = vld [vmem:[#allocation9 + $0x50] sm:$0xff]
      %v184 = vld [vmem:[#allocation9 + $0x58] sm:$0xff]
      %v185 = vld [vmem:[#allocation9 + $0x60] sm:$0xff]
      %v186 = vld [vmem:[#allocation9 + $0x68] sm:$0xff]
      %v187 = vld [vmem:[#allocation9 + $0x70] sm:$0xff]
      %v188 = vld [vmem:[#allocation9 + $0x78] sm:$0xff]
      %v189 = vld [vmem:[%s3] sm:$0x1]
      %v191 = vlaneseq
      %v192 = vshrl.u32 %v191, 7
      %v193 = vsub.s32 0, %v192
      %v194 = vrot.slane %v189, %v193
      %196 = vmatprep.subr.mxu0 0.0
      %197 = vmatpush1.msra.mxu0 %v173
      %198 = vmatprep.subr.mxu0 0.0
      %199 = vmatpush1.msra.mxu0 %v174
      %200 = vmatprep.subr.mxu0 0.0
      %201 = vmatpush1.msra.mxu0 %v175
      %202 = vmatprep.subr.mxu0 0.0
      %203 = vmatpush1.msra.mxu0 %v176
      %204 = vmatprep.subr.mxu0 0.0
      %205 = vmatpush1.msra.mxu0 %v177
      %206 = vmatprep.subr.mxu0 0.0
      %207 = vmatpush1.msra.mxu0 %v178
      %208 = vmatprep.subr.mxu0 0.0
      %209 = vmatpush1.msra.mxu0 %v179
      %210 = vmatprep.subr.mxu0 0.0
      %211 = vmatpush1.msra.mxu0 %v180
      %212 = vmatprep.subr.mxu0 0.0
      %213 = vmatpush1.msra.mxu0 %v181
      %214 = vmatprep.subr.mxu0 0.0
      %215 = vmatpush1.msra.mxu0 %v182
      %216 = vmatprep.subr.mxu0 0.0
      %217 = vmatpush1.msra.mxu0 %v183
      %218 = vmatprep.subr.mxu0 0.0
      %219 = vmatpush1.msra.mxu0 %v184
      %220 = vmatprep.subr.mxu0 0.0
      %221 = vmatpush1.msra.mxu0 %v185
      %222 = vmatprep.subr.mxu0 0.0
      %223 = vmatpush1.msra.mxu0 %v186
      %224 = vmatprep.subr.mxu0 0.0
      %225 = vmatpush1.msra.mxu0 %v187
      %226 = vmatprep.subr.mxu0 0.0
      %227 = vmatpush1.msra.mxu0 %v188
      %228 = vmatprep.subr.mxu0 0.0
      %229 = vmatpush1.msra.mxu0 0.0
      %230 = vmatprep.subr.mxu0 0.0
      %231 = vmatpush1.msra.mxu0 0.0
      %232 = vmatprep.subr.mxu0 0.0
      %233 = vmatpush1.msra.mxu0 0.0
      %234 = vmatprep.subr.mxu0 0.0
      %235 = vmatpush1.msra.mxu0 0.0
      %236 = vmatprep.subr.mxu0 0.0
      %237 = vmatpush1.msra.mxu0 0.0
      %238 = vmatprep.subr.mxu0 0.0
      %239 = vmatpush1.msra.mxu0 0.0
      %240 = vmatprep.subr.mxu0 0.0
      %241 = vmatpush1.msra.mxu0 0.0
      %242 = vmatprep.subr.mxu0 0.0
      %243 = vmatpush1.msra.mxu0 0.0
      %244 = vmatprep.subr.mxu0 0.0
      %245 = vmatpush1.msra.mxu0 0.0
      %246 = vmatprep.subr.mxu0 0.0
      %247 = vmatpush1.msra.mxu0 0.0
      %248 = vmatprep.subr.mxu0 0.0
      %249 = vmatpush1.msra.mxu0 0.0
      %250 = vmatprep.subr.mxu0 0.0
      %251 = vmatpush1.msra.mxu0 0.0
      %252 = vmatprep.subr.mxu0 0.0
      %253 = vmatpush1.msra.mxu0 0.0
      %254 = vmatprep.subr.mxu0 0.0
      %255 = vmatpush1.msra.mxu0 0.0
      %256 = vmatprep.subr.mxu0 0.0
      %257 = vmatpush1.msra.mxu0 0.0
      %258 = vmatprep.subr.mxu0 0.0
      %259 = vmatpush1.msra.mxu0 0.0
      %260 = vmatprep.mubr.f32.mxu0 0.0
      %261 = vmatmul.mubr.f32.gmra.mrb[0].mxu0 %v165
      %v262 = vpop.f32.mrb[0].mxu0
      %v263 = vadd.f32 %v194, %v262
      %v264 = vpop.f32.mrb[0].mxu0
      %265 = vmatprep.mubr.f32.mxu0 0.0
      %266 = vmatmul.mubr.f32.gmra.mrb[0].mxu0 %v170
      %v267 = vpop.f32.mrb[0].mxu0
      %v268 = vadd.f32 %v194, %v267
      %v269 = vpop.f32.mrb[0].mxu0
      %270 = vdwg.mxu0
      %v271 = vmax.f32 %v263, 0.0
      %v272 = vmax.f32 %v268, 0.0
      %v273 = vld [vmem:[#allocation10] sm:$0xff]
      %v274 = vld [vmem:[#allocation10 + $0x8] sm:$0xff]
      %v275 = vld [vmem:[#allocation10 + $0x10] sm:$0xff]
      %v276 = vld [vmem:[#allocation10 + $0x18] sm:$0xff]
      %v277 = vld [vmem:[#allocation10 + $0x20] sm:$0xff]
      %v278 = vld [vmem:[#allocation10 + $0x28] sm:$0xff]
      %v279 = vld [vmem:[#allocation10 + $0x30] sm:$0xff]
      %v280 = vld [vmem:[#allocation10 + $0x38] sm:$0xff]
      %v281 = vld [vmem:[#allocation10 + $0x40] sm:$0xff]
      %v282 = vld [vmem:[#allocation10 + $0x48] sm:$0xff]
      %v283 = vld [vmem:[#allocation10 + $0x50] sm:$0xff]
      %v284 = vld [vmem:[#allocation10 + $0x58] sm:$0xff]
      %v285 = vld [vmem:[#allocation10 + $0x60] sm:$0xff]
      %v286 = vld [vmem:[#allocation10 + $0x68] sm:$0xff]
      %v287 = vld [vmem:[#allocation10 + $0x70] sm:$0xff]
      %v288 = vld [vmem:[#allocation10 + $0x78] sm:$0xff]
      %289 = vmatprep.subr.mxu0 0.0
      %290 = vmatpush1.msra.mxu0 %v273
      %291 = vmatprep.subr.mxu0 0.0
      %292 = vmatpush1.msra.mxu0 %v274
      %293 = vmatprep.subr.mxu0 0.0
      %294 = vmatpush1.msra.mxu0 %v275
      %295 = vmatprep.subr.mxu0 0.0
      %296 = vmatpush1.msra.mxu0 %v276
      %297 = vmatprep.subr.mxu0 0.0
      %298 = vmatpush1.msra.mxu0 %v277
      %299 = vmatprep.subr.mxu0 0.0
      %300 = vmatpush1.msra.mxu0 %v278
      %301 = vmatprep.subr.mxu0 0.0
      %302 = vmatpush1.msra.mxu0 %v279
      %303 = vmatprep.subr.mxu0 0.0
      %304 = vmatpush1.msra.mxu0 %v280
      %305 = vmatprep.subr.mxu0 0.0
      %306 = vmatpush1.msra.mxu0 %v281
      %307 = vmatprep.subr.mxu0 0.0
      %308 = vmatpush1.msra.mxu0 %v282
      %309 = vmatprep.subr.mxu0 0.0
      %310 = vmatpush1.msra.mxu0 %v283
      %311 = vmatprep.subr.mxu0 0.0
      %312 = vmatpush1.msra.mxu0 %v284
      %313 = vmatprep.subr.mxu0 0.0
      %314 = vmatpush1.msra.mxu0 %v285
      %315 = vmatprep.subr.mxu0 0.0
      %316 = vmatpush1.msra.mxu0 %v286
      %317 = vmatprep.subr.mxu0 0.0
      %318 = vmatpush1.msra.mxu0 %v287
      %319 = vmatprep.subr.mxu0 0.0
      %320 = vmatpush1.msra.mxu0 %v288
      %321 = vmatprep.subr.mxu0 0.0
      %322 = vmatpush1.msra.mxu0 0.0
      %323 = vmatprep.subr.mxu0 0.0
      %324 = vmatpush1.msra.mxu0 0.0
      %325 = vmatprep.subr.mxu0 0.0
      %326 = vmatpush1.msra.mxu0 0.0
      %327 = vmatprep.subr.mxu0 0.0
      %328 = vmatpush1.msra.mxu0 0.0
      %329 = vmatprep.subr.mxu0 0.0
      %330 = vmatpush1.msra.mxu0 0.0
      %331 = vmatprep.subr.mxu0 0.0
      %332 = vmatpush1.msra.mxu0 0.0
      %333 = vmatprep.subr.mxu0 0.0
      %334 = vmatpush1.msra.mxu0 0.0
      %335 = vmatprep.subr.mxu0 0.0
      %336 = vmatpush1.msra.mxu0 0.0
      %337 = vmatprep.subr.mxu0 0.0
      %338 = vmatpush1.msra.mxu0 0.0
      %339 = vmatprep.subr.mxu0 0.0
      %340 = vmatpush1.msra.mxu0 0.0
      %341 = vmatprep.subr.mxu0 0.0
      %342 = vmatpush1.msra.mxu0 0.0
      %343 = vmatprep.subr.mxu0 0.0
      %344 = vmatpush1.msra.mxu0 0.0
      %345 = vmatprep.subr.mxu0 0.0
      %346 = vmatpush1.msra.mxu0 0.0
      %347 = vmatprep.subr.mxu0 0.0
      %348 = vmatpush1.msra.mxu0 0.0
      %349 = vmatprep.subr.mxu0 0.0
      %350 = vmatpush1.msra.mxu0 0.0
      %351 = vmatprep.subr.mxu0 0.0
      %352 = vmatpush1.msra.mxu0 0.0
      %353 = vmatprep.mubr.f32.mxu0 0.0
      %354 = vmatmul.mubr.f32.gmra.mrb[0].mxu0 %v271
      %v355 = vpop.f32.mrb[0].mxu0
      %v356 = vadd.f32 0.0, %v355
      %v357 = vpop.f32.mrb[0].mxu0
      %358 = vmatprep.mubr.f32.mxu0 0.0
      %359 = vmatmul.mubr.f32.gmra.mrb[0].mxu0 %v272
      %v360 = vpop.f32.mrb[0].mxu0
      %v361 = vadd.f32 0.0, %v360
      %v362 = vpop.f32.mrb[0].mxu0
      %363 = vdwg.mxu0
      %s364 = scalar_lea.vmem [#allocation2], %s82
      %365 = vst [vmem:[%s364] sm:$0xff] %v356
      %366 = vst [vmem:[%s364 + $0x8] sm:$0xff] %v361
    $region49: #{tpu_custom_call.1} parent=1 // pred_fallthru
      _
    %p367 = scmp.eq.s32.totalorder 0, 0
    // Predicated region
    $region50: #{tpu_custom_call.1} parent=1 // pred_check
      %p368 = pneg %p367
    $region51: #{tpu_custom_call.1} parent=1 // pred_check_branch
      %370 = sbr.rel (%p368) target = $region53
    $region52: #{tpu_custom_call.1} parent=1 // pred_region
      %371 = vst [vmem:[#allocation3] sm:$0xff] 0.0
      %372 = vst [vmem:[#allocation3 + $0x8] sm:$0xff] 0.0
    $region53: #{tpu_custom_call.1} parent=1 // pred_fallthru
      _
    %v373 = vld [vmem:[#allocation3] sm:$0xff]
    %v374 = vld [vmem:[#allocation3 + $0x8] sm:$0xff]
    %v375 = vld [vmem:[%s6] sm:$0xff]
    %v376 = vld [vmem:[%s6 + $0x8] sm:$0xff]
    %s377 = scalar_lea.vmem [#allocation2], %s82
    %v378 = vld [vmem:[%s377] sm:$0xff]
    %v379 = vld [vmem:[%s377 + $0x8] sm:$0xff]
    %vm380 = vcmask 130048
    %v382 = vsel %vm380, %v375, 0
    %v385 = vsel %vm380, %v376, 0
    %387 = vmatprep.subr.mxu0 0.0
    %388 = vmatpush1.msra.mxu0 %v378
    %389 = vmatprep.subr.mxu0 0.0
    %390 = vmatpush1.msra.mxu0 %v379
    %391 = vmatprep.subr.mxu0 0.0
    %392 = vmatpush1.msra.mxu0 0.0
    %393 = vmatprep.subr.mxu0 0.0
    %394 = vmatpush1.msra.mxu0 0.0
    %395 = vmatprep.subr.mxu0 0.0
    %396 = vmatpush1.msra.mxu0 0.0
    %397 = vmatprep.subr.mxu0 0.0
    %398 = vmatpush1.msra.mxu0 0.0
    %399 = vmatprep.subr.mxu0 0.0
    %400 = vmatpush1.msra.mxu0 0.0
    %401 = vmatprep.subr.mxu0 0.0
    %402 = vmatpush1.msra.mxu0 0.0
    %403 = vmatprep.subr.mxu0 0.0
    %404 = vmatpush1.msra.mxu0 0.0
    %405 = vmatprep.subr.mxu0 0.0
    %406 = vmatpush1.msra.mxu0 0.0
    %407 = vmatprep.subr.mxu0 0.0
    %408 = vmatpush1.msra.mxu0 0.0
    %409 = vmatprep.subr.mxu0 0.0
    %410 = vmatpush1.msra.mxu0 0.0
    %411 = vmatprep.subr.mxu0 0.0
    %412 = vmatpush1.msra.mxu0 0.0
    %413 = vmatprep.subr.mxu0 0.0
    %414 = vmatpush1.msra.mxu0 0.0
    %415 = vmatprep.subr.mxu0 0.0
    %416 = vmatpush1.msra.mxu0 0.0
    %417 = vmatprep.subr.mxu0 0.0
    %418 = vmatpush1.msra.mxu0 0.0
    %419 = vmatprep.subr.mxu0 0.0
    %420 = vmatpush1.msra.mxu0 0.0
    %421 = vmatprep.subr.mxu0 0.0
    %422 = vmatpush1.msra.mxu0 0.0
    %423 = vmatprep.subr.mxu0 0.0
    %424 = vmatpush1.msra.mxu0 0.0
    %425 = vmatprep.subr.mxu0 0.0
    %426 = vmatpush1.msra.mxu0 0.0
    %427 = vmatprep.subr.mxu0 0.0
    %428 = vmatpush1.msra.mxu0 0.0
    %429 = vmatprep.subr.mxu0 0.0
    %430 = vmatpush1.msra.mxu0 0.0
    %431 = vmatprep.subr.mxu0 0.0
    %432 = vmatpush1.msra.mxu0 0.0
    %433 = vmatprep.subr.mxu0 0.0
    %434 = vmatpush1.msra.mxu0 0.0
    %435 = vmatprep.subr.mxu0 0.0
    %436 = vmatpush1.msra.mxu0 0.0
    %437 = vmatprep.subr.mxu0 0.0
    %438 = vmatpush1.msra.mxu0 0.0
    %439 = vmatprep.subr.mxu0 0.0
    %440 = vmatpush1.msra.mxu0 0.0
    %441 = vmatprep.subr.mxu0 0.0
    %442 = vmatpush1.msra.mxu0 0.0
    %443 = vmatprep.subr.mxu0 0.0
    %444 = vmatpush1.msra.mxu0 0.0
    %445 = vmatprep.subr.mxu0 0.0
    %446 = vmatpush1.msra.mxu0 0.0
    %447 = vmatprep.subr.mxu0 0.0
    %448 = vmatpush1.msra.mxu0 0.0
    %449 = vmatprep.subr.mxu0 0.0
    %450 = vmatpush1.msra.mxu0 0.0
    %451 = vmatprep.mubr.f32.mxu0 0.0
    %452 = vmatmul.mubr.f32.gmra.mrb[0].mxu0 %v382
    %v453 = vpop.f32.mrb[0].mxu0
    %v454 = vadd.f32 0.0, %v453
    %v455 = vpop.f32.mrb[0].mxu0
    %456 = vmatprep.mubr.f32.mxu0 0.0
    %457 = vmatmul.mubr.f32.gmra.mrb[0].mxu0 %v385
    %v458 = vpop.f32.mrb[0].mxu0
    %v459 = vadd.f32 0.0, %v458
    %v460 = vpop.f32.mrb[0].mxu0
    %461 = vdwg.mxu0
    %v462 = vadd.f32 %v373, %v454
    %v463 = vadd.f32 %v374, %v459
    %464 = vst [vmem:[#allocation3] sm:$0xff] %v462
    %465 = vst [vmem:[#allocation3 + $0x8] sm:$0xff] %v463
    // Predicated region
    $region54: #{tpu_custom_call.1} parent=1 // pred_check
      %p466 = pneg %p367
    $region55: #{tpu_custom_call.1} parent=1 // pred_check_branch
      %468 = sbr.rel (%p466) target = $region57
    $region56: #{tpu_custom_call.1} parent=1 // pred_region
      %v469 = vld [vmem:[#allocation3] sm:$0xff]
      %v470 = vld [vmem:[#allocation3 + $0x8] sm:$0xff]
      %v471 = vld [vmem:[%s5] sm:$0x1]
      %v473 = vlaneseq
      %v474 = vshrl.u32 %v473, 7
      %v475 = vsub.s32 0, %v474
      %v476 = vrot.slane %v471, %v475
      %v478 = vadd.f32 %v469, %v476
      %v479 = vadd.f32 %v470, %v476
      %480 = vst [vmem:[#allocation12] sm:$0xff] %v478
      %481 = vst [vmem:[#allocation12 + $0x8] sm:$0xff] %v479
    $region57: #{tpu_custom_call.1} parent=1 // pred_fallthru
      _
    // Predicated region
    $region58: #{tpu_custom_call.1} parent=1 // pred_check
      _
    $region59: #{tpu_custom_call.1} parent=1 // pred_check_branch
      %483 = sbr.rel (0) target = $region61
    $region60: #{tpu_custom_call.1} parent=1 // pred_region
      %s485 = ssub.s32 256, 256
      %486 = vsyncadd [#allocation6], %s485
      %s487 = sshll.u32 [#allocation12], 4
      %s488 = int_to_ptr.vmem [resolvable:$true] %s487
      %493 = dma.vmem_to_hbm [thread:$0]  %s488, 256, %s7, [#allocation6], 128, 128, 8
    $region61: #{tpu_custom_call.1} parent=1 // pred_fallthru
      _
    // Predicated region
    $region62: #{tpu_custom_call.1} parent=1 // pred_check
      _
    $region63: #{tpu_custom_call.1} parent=1 // pred_check_branch
      %495 = sbr.rel (0) target = $region65
    $region64: #{tpu_custom_call.1} parent=1 // pred_region
      %496 = dma.done [#allocation6], 256
    $region65: #{tpu_custom_call.1} parent=1 // pred_fallthru
      _
    %497 = vsyncpa [#allocation5], 1
    %498 = vsyncpa [#allocation8], 1
    %499 = vsyncpa [#allocation11], 1
    %500 = vsyncpa [#allocation6], 1

</llo_original>
